<compile_context>
chip_gen: v7x
topology: tpu7x:2x2x1
jax: 0.10.0
libtpu: 0.0.40
codegen_flags: <defaults>
</compile_context>

<pallas_src>
import jax
import jax.numpy as jnp
import numpy as np
from jax.experimental import pallas as pl
from jax.experimental.pallas import tpu as pltpu


# ----------------------------------------------------------------------------
# Kernel body
# ----------------------------------------------------------------------------
def _fusion_kernel(w_ref, *refs):
    # w_ref : SMEM (N,) raw fusion weights (pre-ReLU), float32
    # refs  : N input VMEM tiles (TR, LANE) followed by the output tile (TR, LANE)
    *x_refs, o_ref = refs
    n = len(x_refs)

    # Scalar path: ReLU + normalization, one reciprocal per grid step.
    ws = [jnp.maximum(w_ref[i], jnp.float32(0.0)) for i in range(n)]
    s = ws[0]
    for i in range(1, n):
        s = s + ws[i]
    inv_s = jnp.float32(1.0) / s

    # Hot path: f32 accumulation regardless of I/O dtype (safe on v5e which has
    # no bf16 VALU; the win from narrow dtypes is HBM traffic, not ALU).
    acc = (ws[0] * inv_s) * x_refs[0][...].astype(jnp.float32)
    for i in range(1, n):
        acc = acc + (ws[i] * inv_s) * x_refs[i][...].astype(jnp.float32)
    o_ref[...] = acc.astype(o_ref.dtype)


# ----------------------------------------------------------------------------
# Layout / budget helpers
# ----------------------------------------------------------------------------
def _round_down(v, m):
    return (v // m) * m


def _round_up(v, m):
    return ((v + m - 1) // m) * m


def _vmem_budget():
    """(vmem_limit_ceiling, per-block budget) — generation aware."""
    try:
        cap = int(pltpu.get_tpu_info().vmem_capacity_bytes)
    except Exception:
        cap = 64 << 20  # conservative: v7x per-TensorCore VMEM
    limit_ceiling = (3 * cap) // 4          # ≈48 MiB (v7x) / ≈96 MiB (v5e/v6e)
    block_budget = min(limit_ceiling // 2, 48 << 20)
    return limit_ceiling, block_budget


def _choose_layout(total, n_inputs, itemsize, budget_bytes):
    """Pick (lane, rows, row_tile) for a flat elementwise fusion.

    `total` must already be a multiple of 128 (wrapper pads otherwise).
    """
    assert total % 128 == 0
    sub = {4: 8, 2: 16, 1: 32}.get(itemsize, 8)     # min sublane multiple per dtype
    small = total * itemsize <= (2 << 20)

    # Widest lane extent (multiple of 128) dividing the flat size.  For large
    # arrays, require enough rows to build >= 8 minimal row-tiles.
    lane = 128
    for cand in (2048, 1024, 512, 256, 128):
        if total % cand == 0 and (small or (total // cand) >= 8 * sub):
            lane = cand
            break
    rows = total // lane

    if small:
        # Single full-extent lane-dense block, grid=(1,): minimal launch cost.
        return lane, rows, rows

    # Largest row tile fitting the double-buffered (N inputs + 1 output) budget.
    max_tr = budget_bytes // (2 * (n_inputs + 1) * lane * itemsize)
    max_tr = max(sub, _round_down(min(max_tr, rows), sub))
    tr = max_tr

    # Prefer >= 8 grid steps (v7x megacore balance + pipeline overlap) while
    # keeping each tile >= ~1 MiB so per-step overhead stays amortized.
    min_tr_1mib = max(sub, _round_up((1 << 20) // (lane * itemsize), sub))
    steps_target_tr = _round_down(rows // 8, sub)
    if steps_target_tr >= min_tr_1mib:
        tr = min(tr, steps_target_tr)

    return lane, rows, tr


# ----------------------------------------------------------------------------
# Wrapper
# ----------------------------------------------------------------------------
def fusion_forward(x_list, fusion_weight):
    """x_list: list of identically-shaped arrays (e.g. (B, C, H, W)), any float dtype.
    fusion_weight: (len(x_list),) raw weights (pre-ReLU)."""
    n = len(x_list)
    shape = x_list[0].shape
    dtype = x_list[0].dtype
    itemsize = jnp.dtype(dtype).itemsize
    total = int(np.prod(shape))

    # Flatten (contiguous reshape, free).  Pad only if not lane-divisible.
    flats = [x.reshape(-1) for x in x_list]
    padded_total = total
    if total % 128 != 0:
        # TODO(synk): avoid this HBM copy by DMA-ing the tail with a masked store
        # instead of padding the whole flattened array.
        padded_total = _round_up(total, 128)
        pad = padded_total - total
        flats = [jnp.pad(f, (0, pad)) for f in flats]

    vmem_ceiling, block_budget = _vmem_budget()
    lane, rows, tr = _choose_layout(padded_total, n, itemsize, block_budget)
    grid = (pl.cdiv(rows, tr),)          # remainder-tolerant: last block may be partial

    x2d = [f.reshape(rows, lane) for f in flats]

    tile_spec = pl.BlockSpec((tr, lane), lambda i: (i, 0))
    in_specs = [pl.BlockSpec(memory_space=pltpu.MemorySpace.SMEM)]  # weights
    in_specs += [tile_spec] * n

    # Double-buffered blocks + headroom, clamped to ~3/4 of physical VMEM.
    vmem_needed = 2 * (n + 1) * tr * lane * itemsize
    vmem_limit = int(min(vmem_ceiling, max(vmem_needed + (8 << 20), 32 << 20)))

    cost = pl.CostEstimate(
        flops=2 * n * total,
        transcendentals=0,
        bytes_accessed=(n + 1) * total * itemsize,
    )

    out2d = pl.pallas_call(
        _fusion_kernel,
        out_shape=jax.ShapeDtypeStruct((rows, lane), dtype),
        grid_spec=pl.GridSpec(
            grid=grid,
            in_specs=in_specs,
            out_specs=pl.BlockSpec((tr, lane), lambda i: (i, 0)),
        ),
        compiler_params=pltpu.CompilerParams(
            dimension_semantics=("parallel",),
            vmem_limit_bytes=vmem_limit,
        ),
        cost_estimate=cost,
    )(jnp.asarray(fusion_weight, dtype=jnp.float32), *x2d)

    out_flat = out2d.reshape(-1)
    if padded_total != total:
        out_flat = out_flat[:total]
    return out_flat.reshape(shape)


def fusion_reference(x_list, fusion_weight):
    w = jnp.maximum(jnp.asarray(fusion_weight, jnp.float32), 0.0)
    w = w / jnp.sum(w, axis=0)
    acc = w[0] * x_list[0].astype(jnp.float32)
    for i in range(1, len(x_list)):
        acc = acc + w[i] * x_list[i].astype(jnp.float32)
    return acc


# ----------------------------------------------------------------------------
# Self-test
# ----------------------------------------------------------------------------
if __name__ == "__main__":
    key = jax.random.PRNGKey(0)

    # --- Primary: module-consistent small shape, float32 -------------------
    n_inputs = 3
    B, C, H, W = 2, 4, 16, 16
    fusion_weight = jnp.ones((n_inputs,), dtype=jnp.float32)  # nn.Parameter(torch.ones)

    keys = jax.random.split(key, n_inputs)
    x_list = [jax.random.normal(k, (B, C, H, W), dtype=jnp.float32) for k in keys]

    out = jax.block_until_ready(fusion_forward(x_list, fusion_weight))
    ref = fusion_reference(x_list, fusion_weight)
    np.testing.assert_allclose(np.asarray(out), np.asarray(ref), rtol=1e-5, atol=1e-6)

    # --- Secondary: larger bf16 case exercising the tiled / partial-block path
    key2 = jax.random.PRNGKey(0)
    keys2 = jax.random.split(key2, n_inputs)
    shape2 = (2, 32, 160, 160)
    fw2 = jnp.asarray([0.5, 1.5, 2.0], dtype=jnp.float32)
    x2 = [jax.random.normal(k, shape2, dtype=jnp.float32).astype(jnp.bfloat16)
          for k in keys2]

    out2 = jax.block_until_ready(fusion_forward(x2, fw2))
    ref2 = fusion_reference(x2, fw2)
    np.testing.assert_allclose(
        np.asarray(out2, dtype=np.float32), np.asarray(ref2),
        rtol=1.5e-2, atol=1e-2)

    print("KERNEL_OK")
</pallas_src>

<mosaic_0001>
module attributes {stable_mosaic.version = 11 : i64} {
  func.func @_fusion_kernel(%arg0: i32, %arg1: memref<3xf32, #tpu.memory_space<smem>>, %arg2: memref<1x2048xf32, #tpu.memory_space<vmem>>, %arg3: memref<1x2048xf32, #tpu.memory_space<vmem>>, %arg4: memref<1x2048xf32, #tpu.memory_space<vmem>>, %arg5: memref<1x2048xf32, #tpu.memory_space<vmem>>) attributes {dimension_semantics = [#tpu.dimension_semantics<parallel>], iteration_bounds = array<i64: 1>, scalar_prefetch = 0 : i64, scratch_operands = 0 : i64, tpu.core_type = #tpu.core_type<tc>, window_params = [{transform_indices = @transform_0, window_bounds = array<i64: 3>}, {transform_indices = @transform_1, window_bounds = array<i64: 1, 2048>}, {transform_indices = @transform_2, window_bounds = array<i64: 1, 2048>}, {transform_indices = @transform_3, window_bounds = array<i64: 1, 2048>}, {transform_indices = @transform_4, window_bounds = array<i64: 1, 2048>}]} {
    %c0 = arith.constant 0 : index
    %0 = memref.load %arg1[%c0] : memref<3xf32, #tpu.memory_space<smem>>
    %cst = arith.constant 0.000000e+00 : f32
    %1 = arith.maximumf %0, %cst : f32
    %c1 = arith.constant 1 : index
    %2 = memref.load %arg1[%c1] : memref<3xf32, #tpu.memory_space<smem>>
    %cst_0 = arith.constant 0.000000e+00 : f32
    %3 = arith.maximumf %2, %cst_0 : f32
    %c2 = arith.constant 2 : index
    %4 = memref.load %arg1[%c2] : memref<3xf32, #tpu.memory_space<smem>>
    %cst_1 = arith.constant 0.000000e+00 : f32
    %5 = arith.maximumf %4, %cst_1 : f32
    %6 = arith.addf %1, %3 : f32
    %7 = arith.addf %6, %5 : f32
    %cst_2 = arith.constant 1.000000e+00 : f32
    %8 = arith.divf %cst_2, %7 : f32
    %9 = arith.mulf %1, %8 : f32
    %c0_3 = arith.constant 0 : index
    %c0_4 = arith.constant 0 : index
    %10 = vector.load %arg2[%c0_3, %c0_4] : memref<1x2048xf32, #tpu.memory_space<vmem>>, vector<1x2048xf32>
    %11 = vector.broadcast %9 : f32 to vector<1x2048xf32>
    %12 = arith.mulf %11, %10 : vector<1x2048xf32>
    %13 = arith.mulf %3, %8 : f32
    %c0_5 = arith.constant 0 : index
    %c0_6 = arith.constant 0 : index
    %14 = vector.load %arg3[%c0_5, %c0_6] : memref<1x2048xf32, #tpu.memory_space<vmem>>, vector<1x2048xf32>
    %15 = vector.broadcast %13 : f32 to vector<1x2048xf32>
    %16 = arith.mulf %15, %14 : vector<1x2048xf32>
    %17 = arith.addf %12, %16 : vector<1x2048xf32>
    %18 = arith.mulf %5, %8 : f32
    %c0_7 = arith.constant 0 : index
    %c0_8 = arith.constant 0 : index
    %19 = vector.load %arg4[%c0_7, %c0_8] : memref<1x2048xf32, #tpu.memory_space<vmem>>, vector<1x2048xf32>
    %20 = vector.broadcast %18 : f32 to vector<1x2048xf32>
    %21 = arith.mulf %20, %19 : vector<1x2048xf32>
    %22 = arith.addf %17, %21 : vector<1x2048xf32>
    %c0_9 = arith.constant 0 : index
    %c0_10 = arith.constant 0 : index
    %23 = vector.load %arg5[%c0_9, %c0_10] : memref<1x2048xf32, #tpu.memory_space<vmem>>, vector<1x2048xf32>
    tpu.vector_store %arg5[%c0_9, %c0_10], %22 {strides = array<i32>} : memref<1x2048xf32, #tpu.memory_space<vmem>>, vector<1x2048xf32>,
    return
  }
  func.func @transform_0(%arg0: i32) -> i32 {
    %c0_i32 = arith.constant 0 : i32
    %c0_i32_0 = arith.constant 0 : i32
    return %c0_i32 : i32
  }
  func.func @transform_1(%arg0: i32) -> (i32, i32) {
    %c0_i32 = arith.constant 0 : i32
    %c0_i32_0 = arith.constant 0 : i32
    return %arg0, %c0_i32 : i32, i32
  }
  func.func @transform_2(%arg0: i32) -> (i32, i32) {
    %c0_i32 = arith.constant 0 : i32
    %c0_i32_0 = arith.constant 0 : i32
    return %arg0, %c0_i32 : i32, i32
  }
  func.func @transform_3(%arg0: i32) -> (i32, i32) {
    %c0_i32 = arith.constant 0 : i32
    %c0_i32_0 = arith.constant 0 : i32
    return %arg0, %c0_i32 : i32, i32
  }
  func.func @transform_4(%arg0: i32) -> (i32, i32) {
    %c0_i32 = arith.constant 0 : i32
    %c0_i32_0 = arith.constant 0 : i32
    return %arg0, %c0_i32 : i32, i32
  }
}

</mosaic_0001>

<llo_original>
// kernel: tpu_custom_call.1
$region0: #{tpu_custom_call.1}
  #allocation0 [shape = 'u32[]', space=smem, size = 0x4, offset = 0x4, fixed_abs, tag = 'smem constant byte address 0x4 - core index']
  #allocation1 [shape = 'u32[144,128]{1,0:T(1,128)}', space=vmem, size = 0x12000, scoped, tag = 'internal scratch']
  %s0 = inlined_call_operand.hbm [shape: f32[3], index: 0, kind: input, shape index: {}]
  %s1 = inlined_call_operand.hbm [shape: f32[1,2048], index: 1, kind: input, shape index: {}]
  %s2 = inlined_call_operand.hbm [shape: f32[1,2048], index: 2, kind: input, shape index: {}]
  %s3 = inlined_call_operand.hbm [shape: f32[1,2048], index: 3, kind: input, shape index: {}]
  %s4 = inlined_call_operand.hbm [shape: f32[1,2048], index: 4, kind: output, shape index: {}]
  %s5 = sld [smem:[#allocation0]]
  $region42: #{tpu_custom_call.1} parent=0
    _
  %s7 = ssub.s32 1, %s5
  %s8 = scalar_select 0, %s7, %s5
  $region1: #{tpu_custom_call.1} parent=0
    #allocation2 [shape = 'u8[512]{0}', space=smem, size = 0x200, scoped, tag = 'input window, operand 0, single buffered']
    #allocation3 [shape = 's32[1]{0}', space=sflag, size = 0x4, scoped, tag = 'scoped memory for tpu_custom_call.1']
    #allocation4 [shape = 's32[1]{0}', space=sflag, size = 0x4, scoped, tag = 'scoped memory for tpu_custom_call.1']
    #allocation5 [shape = 's32[1]{0}', space=sflag, size = 0x4, scoped, tag = 'scoped memory for tpu_custom_call.1']
    #allocation6 [shape = 'u8[8192]{0}', space=vmem, size = 0x2000, scoped, tag = 'input window, operand 1, single buffered']
    #allocation7 [shape = 'u8[8192]{0}', space=vmem, size = 0x2000, scoped, tag = 'input window, operand 2, single buffered']
    #allocation8 [shape = 's32[1]{0}', space=sflag, size = 0x4, scoped, tag = 'scoped memory for tpu_custom_call.1']
    #allocation9 [shape = 'u8[8192]{0}', space=vmem, size = 0x2000, scoped, tag = 'input window, operand 3, single buffered']
    #allocation10 [shape = 'u8[8192]{0}', space=vmem, size = 0x2000, scoped, tag = 'output window, operand 0, single buffered']
    %9 = vsyncpa [#allocation5], 0
    %10 = vsyncpa [#allocation3], 0
    %11 = vsyncpa [#allocation8], 0
    %12 = vsyncpa [#allocation4], 0
    // Predicated region
    $region2: #{tpu_custom_call.1} parent=1 // pred_check
      _
    $region3: #{tpu_custom_call.1} parent=1 // pred_check_branch
      %14 = sbr.rel (0) target = $region5
    $region4: #{tpu_custom_call.1} parent=1 // pred_region
      %s16 = ssub.s32 16, 16
      %17 = vsyncadd [#allocation5], %s16
      %20 = dma.hbm_to_smem %s0, 16, [#allocation2], [#allocation5]
    $region5: #{tpu_custom_call.1} parent=1 // pred_fallthru
      _
    // Predicated region
    $region6: #{tpu_custom_call.1} parent=1 // pred_check
      _
    $region7: #{tpu_custom_call.1} parent=1 // pred_check_branch
      %22 = sbr.rel (0) target = $region9
    $region8: #{tpu_custom_call.1} parent=1 // pred_region
      %s24 = ssub.s32 256, 256
      %25 = vsyncadd [#allocation3], %s24
      %s27 = sshll.u32 [#allocation6], 4
      %s28 = int_to_ptr.vmem [resolvable:$true] %s27
      %30 = dma.hbm_to_vmem [thread:$0]  %s1, 256, %s28, [#allocation3]
    $region9: #{tpu_custom_call.1} parent=1 // pred_fallthru
      _
    // Predicated region
    $region10: #{tpu_custom_call.1} parent=1 // pred_check
      _
    $region11: #{tpu_custom_call.1} parent=1 // pred_check_branch
      %32 = sbr.rel (0) target = $region13
    $region12: #{tpu_custom_call.1} parent=1 // pred_region
      %s34 = ssub.s32 256, 256
      %35 = vsyncadd [#allocation8], %s34
      %s37 = sshll.u32 [#allocation7], 4
      %s38 = int_to_ptr.vmem [resolvable:$true] %s37
      %40 = dma.hbm_to_vmem [thread:$0]  %s2, 256, %s38, [#allocation8]
    $region13: #{tpu_custom_call.1} parent=1 // pred_fallthru
      _
    // Predicated region
    $region14: #{tpu_custom_call.1} parent=1 // pred_check
      _
    $region15: #{tpu_custom_call.1} parent=1 // pred_check_branch
      %42 = sbr.rel (0) target = $region17
    $region16: #{tpu_custom_call.1} parent=1 // pred_region
      %s44 = ssub.s32 256, 256
      %45 = vsyncadd [#allocation8], %s44
      %s47 = sshll.u32 [#allocation9], 4
      %s48 = int_to_ptr.vmem [resolvable:$true] %s47
      %50 = dma.hbm_to_vmem [thread:$0]  %s3, 256, %s48, [#allocation8]
    $region17: #{tpu_custom_call.1} parent=1 // pred_fallthru
      _
    // Predicated region
    $region18: #{tpu_custom_call.1} parent=1 // pred_check
      _
    $region19: #{tpu_custom_call.1} parent=1 // pred_check_branch
      %52 = sbr.rel (0) target = $region21
    $region20: #{tpu_custom_call.1} parent=1 // pred_region
      %53 = dma.done [#allocation5], 16
    $region21: #{tpu_custom_call.1} parent=1 // pred_fallthru
      _
    // Predicated region
    $region22: #{tpu_custom_call.1} parent=1 // pred_check
      _
    $region23: #{tpu_custom_call.1} parent=1 // pred_check_branch
      %55 = sbr.rel (0) target = $region25
    $region24: #{tpu_custom_call.1} parent=1 // pred_region
      %56 = dma.done [#allocation3], 256
    $region25: #{tpu_custom_call.1} parent=1 // pred_fallthru
      _
    // Predicated region
    $region26: #{tpu_custom_call.1} parent=1 // pred_check
      _
    $region27: #{tpu_custom_call.1} parent=1 // pred_check_branch
      %58 = sbr.rel (0) target = $region29
    $region28: #{tpu_custom_call.1} parent=1 // pred_region
      %59 = dma.done [#allocation8], 256
    $region29: #{tpu_custom_call.1} parent=1 // pred_fallthru
      _
    // Predicated region
    $region30: #{tpu_custom_call.1} parent=1 // pred_check
      _
    $region31: #{tpu_custom_call.1} parent=1 // pred_check_branch
      %61 = sbr.rel (0) target = $region33
    $region32: #{tpu_custom_call.1} parent=1 // pred_region
      %62 = dma.done [#allocation8], 256
    $region33: #{tpu_custom_call.1} parent=1 // pred_fallthru
      _
    %63 = sfence
    %s64 = sld [smem:[#allocation2]]
    %s65 = smax.f32 %s64, 0.0
    %s66 = sld [smem:[#allocation2 + $0x1]]
    %s67 = smax.f32 %s66, 0.0
    %s68 = sld [smem:[#allocation2 + $0x2]]
    %s69 = smax.f32 %s68, 0.0
    %s70 = sadd.f32 %s65, %s67
    %s71 = sadd.f32 %s70, %s69
    %v72 = vstv %s71
    %v73 = vrcp.pop %v72
    %s74 = vtos %v73
    %s75 = smul.f32 %s65, %s74
    %v76 = vld [vmem:[#allocation6] sm:$0xff]
    %v77 = vld [vmem:[#allocation6 + $0x8] sm:$0xff]
    %v78 = vstv %s75
    %v79 = vmul.f32 %v78, %v76
    %v80 = vmul.f32 %v78, %v77
    %s81 = smul.f32 %s67, %s74
    %v82 = vld [vmem:[#allocation7] sm:$0xff]
    %v83 = vld [vmem:[#allocation7 + $0x8] sm:$0xff]
    %v84 = vstv %s81
    %v85 = vmul.f32 %v84, %v82
    %v86 = vmul.f32 %v84, %v83
    %v87 = vadd.f32 %v79, %v85
    %v88 = vadd.f32 %v80, %v86
    %s89 = smul.f32 %s69, %s74
    %v90 = vld [vmem:[#allocation9] sm:$0xff]
    %v91 = vld [vmem:[#allocation9 + $0x8] sm:$0xff]
    %v92 = vstv %s89
    %v93 = vmul.f32 %v92, %v90
    %v94 = vmul.f32 %v92, %v91
    %v95 = vadd.f32 %v87, %v93
    %v96 = vadd.f32 %v88, %v94
    %97 = vst [vmem:[#allocation10] sm:$0xff] %v95
    %98 = vst [vmem:[#allocation10 + $0x8] sm:$0xff] %v96
    // Predicated region
    $region34: #{tpu_custom_call.1} parent=1 // pred_check
      _
    $region35: #{tpu_custom_call.1} parent=1 // pred_check_branch
      %100 = sbr.rel (0) target = $region37
    $region36: #{tpu_custom_call.1} parent=1 // pred_region
      %s102 = ssub.s32 256, 256
      %103 = vsyncadd [#allocation4], %s102
      %s105 = sshll.u32 [#allocation10], 4
      %s106 = int_to_ptr.vmem [resolvable:$true] %s105
      %108 = dma.vmem_to_hbm [thread:$0]  %s106, 256, %s4, [#allocation4]
    $region37: #{tpu_custom_call.1} parent=1 // pred_fallthru
      _
    // Predicated region
    $region38: #{tpu_custom_call.1} parent=1 // pred_check
      _
    $region39: #{tpu_custom_call.1} parent=1 // pred_check_branch
      %110 = sbr.rel (0) target = $region41
    $region40: #{tpu_custom_call.1} parent=1 // pred_region
      %111 = dma.done [#allocation4], 256
    $region41: #{tpu_custom_call.1} parent=1 // pred_fallthru
      _
    %112 = vsyncpa [#allocation3], 1
    %113 = vsyncpa [#allocation8], 1
    %114 = vsyncpa [#allocation4], 1
    %115 = vsyncpa [#allocation5], 1

</llo_original>
